<compile_context>
chip_gen: v6e
topology: v6e:2x2x1
jax: 0.10.0
libtpu: 0.0.40
codegen_flags: <defaults>
</compile_context>

<pallas_src>
import functools

import jax
import jax.numpy as jnp
from jax.experimental import pallas as pl
from jax.experimental.pallas import tpu as pltpu


def _round_up(n, m):
    return ((n + m - 1) // m) * m


def _mlp_kernel(x_ref, w1_ref, b1_ref, w2_ref, b2_ref, w3_ref, b3_ref, out_ref):
    # Weights are bf16; all dots accumulate in f32 on the MXU.  The epilogue
    # dtype (bias add + ReLU) is taken from the bias dtype: bf16 on chips with
    # a bf16 VPU (v6e/v7x), f32 otherwise (v5e and older).
    ep = b1_ref.dtype
    x = x_ref[...].astype(jnp.bfloat16)          # cast hides under the matmul

    # layer_1 (+ folded eval BN1 + bias) -> relu
    h = jnp.dot(x, w1_ref[...], preferred_element_type=jnp.float32)
    h = jnp.maximum(h.astype(ep) + b1_ref[...], 0).astype(jnp.bfloat16)

    # layer_2 (+ folded eval BN2 + bias) -> relu -> dropout (eval: identity)
    h = jnp.dot(h, w2_ref[...], preferred_element_type=jnp.float32)
    h = jnp.maximum(h.astype(ep) + b2_ref[...], 0).astype(jnp.bfloat16)

    # layer_out -> sigmoid * 3 (kept in f32 for accuracy)
    z = jnp.dot(h, w3_ref[...], preferred_element_type=jnp.float32) + b3_ref[...]
    out_ref[...] = (jax.nn.sigmoid(z) * 3.0).astype(out_ref.dtype)


def _epilogue_dtype():
    """bf16 epilogue on chips with a bf16 VPU (v6e/v7x); f32 on v5e and older."""
    try:
        kind = jax.devices()[0].device_kind.lower()
    except Exception:  # pragma: no cover - fallback, correctness is dtype-agnostic
        return jnp.float32
    if any(tag in kind for tag in ("v2", "v3", "v4", "v5")):
        return jnp.float32
    return jnp.bfloat16


def fold_params(params, *, eps=1e-5, epilogue_dtype=jnp.float32):
    """Fold eval-mode BatchNorm + Linear bias into (W, b) and cast for the kernel.

    Call ONCE and reuse across forward calls so the weights are stable HBM
    buffers (the kernel keeps them VMEM-resident via a constant index_map).
      (xW + b) * s + t == x (W * s) + (b * s + t),  s = g/sqrt(v+eps), t = B - m*s
    """
    def bn_fold(g, b, m, v):
        s = g * jax.lax.rsqrt(v + eps)
        return s, b - m * s

    s1, t1 = bn_fold(params["bn1_g"], params["bn1_b"], params["bn1_m"], params["bn1_v"])
    s2, t2 = bn_fold(params["bn2_g"], params["bn2_b"], params["bn2_m"], params["bn2_v"])

    w1 = (params["w1"] * s1[None, :]).astype(jnp.bfloat16)
    b1 = (params["b1"] * s1 + t1).astype(epilogue_dtype)[None, :]
    w2 = (params["w2"] * s2[None, :]).astype(jnp.bfloat16)
    b2 = (params["b2"] * s2 + t2).astype(epilogue_dtype)[None, :]
    w3 = params["w3"].astype(jnp.bfloat16)
    b3 = params["b3"].astype(jnp.float32)[None, :]     # final layer stays f32
    return w1, b1, w2, b2, w3, b3


@functools.partial(jax.jit, static_argnames=("tile_b",))
def linear_regression_head_two_hidden(x, folded_params, *, tile_b=2048):
    """x: (B, num_feature) float32. folded_params: output of fold_params()."""
    w1, b1, w2, b2, w3, b3 = folded_params
    B, num_feature = x.shape
    num_class = w3.shape[1]

    # Batch tiling. Big tiles amortize the ~0.35us/step pipeline overhead; the
    # last block may be ragged (rows are independent, OOB writes are masked).
    tile_b = _round_up(max(int(tile_b), 16), 16)
    tb = min(tile_b, _round_up(B, 8))
    if pl.cdiv(B, tb) < 2 and B >= 32:
        # Guarantee >=2 grid steps so the "parallel" batch axis can use both
        # v7x TensorCores (no-op cost on 1-TC v5e/v6e).
        tb = _round_up(pl.cdiv(B, 2), 16)
    grid = pl.cdiv(B, tb)

    batch_map = lambda i: (i, 0)      # x / out: walk the batch axis
    resident_map = lambda i: (0, 0)   # weights / biases: stay VMEM-resident

    return pl.pallas_call(
        _mlp_kernel,
        out_shape=jax.ShapeDtypeStruct((B, num_class), jnp.float32),
        grid=(grid,),
        in_specs=[
            pl.BlockSpec((tb, num_feature), batch_map),
            pl.BlockSpec(w1.shape, resident_map),
            pl.BlockSpec(b1.shape, resident_map),
            pl.BlockSpec(w2.shape, resident_map),
            pl.BlockSpec(b2.shape, resident_map),
            pl.BlockSpec(w3.shape, resident_map),
            pl.BlockSpec(b3.shape, resident_map),
        ],
        out_specs=pl.BlockSpec((tb, num_class), batch_map),
        compiler_params=pltpu.CompilerParams(
            dimension_semantics=("parallel",),
            vmem_limit_bytes=32 * 1024 * 1024),
    )(x, w1, b1, w2, b2, w3, b3)


def init_params(key, num_feature, num_class):
    """Deterministic init matching the PyTorch module's parameter shapes.

    nn.Linear(in, out) -> weight (out, in), bias (out,). We store weights
    transposed as (in, out) for the kernel's x @ W convention.
    """
    dims = [(num_feature, 128), (128, 64), (64, num_class)]
    params = {}
    keys = jax.random.split(key, 14)
    ki = 0
    for li, (fin, fout) in enumerate(dims, start=1):
        bound = 1.0 / jnp.sqrt(fin)
        params[f"w{li}"] = jax.random.uniform(
            keys[ki], (fin, fout), jnp.float32, -bound, bound); ki += 1
        params[f"b{li}"] = jax.random.uniform(
            keys[ki], (fout,), jnp.float32, -bound, bound); ki += 1
    # BatchNorm1d params / running stats for the 128- and 64-wide hidden layers.
    for bi, f in zip((1, 2), (128, 64)):
        params[f"bn{bi}_g"] = 1.0 + 0.1 * jax.random.normal(keys[ki], (f,), jnp.float32); ki += 1
        params[f"bn{bi}_b"] = 0.1 * jax.random.normal(keys[ki], (f,), jnp.float32); ki += 1
        params[f"bn{bi}_m"] = 0.05 * jax.random.normal(keys[ki], (f,), jnp.float32); ki += 1
        params[f"bn{bi}_v"] = jnp.abs(
            1.0 + 0.1 * jax.random.normal(keys[ki], (f,), jnp.float32)); ki += 1
    return params


def _reference_forward(x, params, eps=1e-5):
    """Pure-JAX f32 eval-mode reference (matches the PyTorch module)."""
    h = x @ params["w1"] + params["b1"]
    h = (h - params["bn1_m"]) * jax.lax.rsqrt(params["bn1_v"] + eps) \
        * params["bn1_g"] + params["bn1_b"]
    h = jnp.maximum(h, 0.0)
    h = h @ params["w2"] + params["b2"]
    h = (h - params["bn2_m"]) * jax.lax.rsqrt(params["bn2_v"] + eps) \
        * params["bn2_g"] + params["bn2_b"]
    h = jnp.maximum(h, 0.0)
    h = h @ params["w3"] + params["b3"]
    return jax.nn.sigmoid(h) * 3.0


if __name__ == "__main__":
    num_feature = 32
    num_class = 4
    batch = 8

    key = jax.random.PRNGKey(0)
    k_x, k_p = jax.random.split(key)
    x = jax.random.normal(k_x, (batch, num_feature), jnp.float32)
    params = init_params(k_p, num_feature, num_class)

    folded = fold_params(params, epilogue_dtype=_epilogue_dtype())

    out = linear_regression_head_two_hidden(x, folded)
    out = jax.block_until_ready(out)

    assert out.shape == (batch, num_class), out.shape
    assert bool(jnp.all(jnp.isfinite(out)))
    assert bool(jnp.all(out >= 0.0)) and bool(jnp.all(out <= 3.0))

    # Loose tolerance vs. the f32 reference (weights/activations are bf16).
    ref = _reference_forward(x, params)
    max_err = float(jnp.max(jnp.abs(out - ref)))
    assert max_err < 0.25, f"max abs err vs f32 reference: {max_err}"

    print("KERNEL_OK")
</pallas_src>

<mosaic_0001>
module attributes {stable_mosaic.version = 11 : i64} {
  func.func @_mlp_kernel(%arg0: i32, %arg1: memref<8x32xf32, #tpu.memory_space<vmem>>, %arg2: memref<32x128xbf16, #tpu.memory_space<vmem>>, %arg3: memref<1x128xbf16, #tpu.memory_space<vmem>>, %arg4: memref<128x64xbf16, #tpu.memory_space<vmem>>, %arg5: memref<1x64xbf16, #tpu.memory_space<vmem>>, %arg6: memref<64x4xbf16, #tpu.memory_space<vmem>>, %arg7: memref<1x4xf32, #tpu.memory_space<vmem>>, %arg8: memref<8x4xf32, #tpu.memory_space<vmem>>) attributes {dimension_semantics = [#tpu.dimension_semantics<parallel>], iteration_bounds = array<i64: 1>, scalar_prefetch = 0 : i64, scratch_operands = 0 : i64, tpu.core_type = #tpu.core_type<tc>, window_params = [{transform_indices = @transform_0, window_bounds = array<i64: 8, 32>}, {pipeline_mode = #tpu.pipeline_mode<synchronous>, transform_indices = @transform_1, window_bounds = array<i64: 32, 128>}, {pipeline_mode = #tpu.pipeline_mode<synchronous>, transform_indices = @transform_2, window_bounds = array<i64: 1, 128>}, {pipeline_mode = #tpu.pipeline_mode<synchronous>, transform_indices = @transform_3, window_bounds = array<i64: 128, 64>}, {pipeline_mode = #tpu.pipeline_mode<synchronous>, transform_indices = @transform_4, window_bounds = array<i64: 1, 64>}, {pipeline_mode = #tpu.pipeline_mode<synchronous>, transform_indices = @transform_5, window_bounds = array<i64: 64, 4>}, {pipeline_mode = #tpu.pipeline_mode<synchronous>, transform_indices = @transform_6, window_bounds = array<i64: 1, 4>}, {transform_indices = @transform_7, window_bounds = array<i64: 8, 4>}]} {
    %c0 = arith.constant 0 : index
    %c0_0 = arith.constant 0 : index
    %0 = vector.load %arg1[%c0, %c0_0] : memref<8x32xf32, #tpu.memory_space<vmem>>, vector<8x32xf32>
    %1 = arith.truncf %0 : vector<8x32xf32> to vector<8x32xbf16>
    %c0_1 = arith.constant 0 : index
    %c0_2 = arith.constant 0 : index
    %2 = vector.load %arg2[%c0_1, %c0_2] : memref<32x128xbf16, #tpu.memory_space<vmem>>, vector<32x128xbf16>
    %cst = arith.constant dense<0.000000e+00> : vector<8x128xf32>
    %3 = tpu.matmul %1, %2, %cst {dimension_numbers = #tpu.dot_dimension_numbers<[1], [0], [0], [1], [0, 0, 1, 1], [], []>} : vector<8x32xbf16>, vector<32x128xbf16>, vector<8x128xf32> -> vector<8x128xf32>
    %4 = arith.truncf %3 : vector<8x128xf32> to vector<8x128xbf16>
    %c0_3 = arith.constant 0 : index
    %c0_4 = arith.constant 0 : index
    %5 = vector.load %arg3[%c0_3, %c0_4] : memref<1x128xbf16, #tpu.memory_space<vmem>>, vector<1x128xbf16>
    %6 = vector.broadcast %5 : vector<1x128xbf16> to vector<8x128xbf16>
    %7 = arith.addf %4, %6 : vector<8x128xbf16>
    %cst_5 = arith.constant 0.000000e+00 : bf16
    %8 = vector.broadcast %cst_5 : bf16 to vector<8x128xbf16>
    %9 = arith.maximumf %7, %8 : vector<8x128xbf16>
    %c0_6 = arith.constant 0 : index
    %c0_7 = arith.constant 0 : index
    %10 = vector.load %arg4[%c0_6, %c0_7] : memref<128x64xbf16, #tpu.memory_space<vmem>>, vector<128x64xbf16>
    %cst_8 = arith.constant dense<0.000000e+00> : vector<8x64xf32>
    %11 = tpu.matmul %9, %10, %cst_8 {dimension_numbers = #tpu.dot_dimension_numbers<[1], [0], [0], [1], [0, 0, 1, 1], [], []>} : vector<8x128xbf16>, vector<128x64xbf16>, vector<8x64xf32> -> vector<8x64xf32>
    %12 = arith.truncf %11 : vector<8x64xf32> to vector<8x64xbf16>
    %c0_9 = arith.constant 0 : index
    %c0_10 = arith.constant 0 : index
    %13 = vector.load %arg5[%c0_9, %c0_10] : memref<1x64xbf16, #tpu.memory_space<vmem>>, vector<1x64xbf16>
    %14 = vector.broadcast %13 : vector<1x64xbf16> to vector<8x64xbf16>
    %15 = arith.addf %12, %14 : vector<8x64xbf16>
    %cst_11 = arith.constant 0.000000e+00 : bf16
    %16 = vector.broadcast %cst_11 : bf16 to vector<8x64xbf16>
    %17 = arith.maximumf %15, %16 : vector<8x64xbf16>
    %c0_12 = arith.constant 0 : index
    %c0_13 = arith.constant 0 : index
    %18 = vector.load %arg6[%c0_12, %c0_13] : memref<64x4xbf16, #tpu.memory_space<vmem>>, vector<64x4xbf16>
    %cst_14 = arith.constant dense<0.000000e+00> : vector<8x4xf32>
    %19 = tpu.matmul %17, %18, %cst_14 {dimension_numbers = #tpu.dot_dimension_numbers<[1], [0], [0], [1], [0, 0, 1, 1], [], []>} : vector<8x64xbf16>, vector<64x4xbf16>, vector<8x4xf32> -> vector<8x4xf32>
    %c0_15 = arith.constant 0 : index
    %c0_16 = arith.constant 0 : index
    %20 = vector.load %arg7[%c0_15, %c0_16] : memref<1x4xf32, #tpu.memory_space<vmem>>, vector<1x4xf32>
    %21 = vector.broadcast %20 : vector<1x4xf32> to vector<8x4xf32>
    %22 = arith.addf %19, %21 : vector<8x4xf32>
    %23 = arith.negf %22 : vector<8x4xf32>
    %24 = math.exp %23 : vector<8x4xf32>
    %cst_17 = arith.constant 1.000000e+00 : f32
    %25 = vector.broadcast %cst_17 : f32 to vector<8x4xf32>
    %26 = arith.addf %25, %24 : vector<8x4xf32>
    %27 = arith.divf %25, %26 : vector<8x4xf32>
    %cst_18 = arith.constant 3.000000e+00 : f32
    %28 = vector.broadcast %cst_18 : f32 to vector<8x4xf32>
    %29 = arith.mulf %27, %28 : vector<8x4xf32>
    %c0_19 = arith.constant 0 : index
    %c0_20 = arith.constant 0 : index
    %30 = vector.load %arg8[%c0_19, %c0_20] : memref<8x4xf32, #tpu.memory_space<vmem>>, vector<8x4xf32>
    tpu.vector_store %arg8[%c0_19, %c0_20], %29 {strides = array<i32>} : memref<8x4xf32, #tpu.memory_space<vmem>>, vector<8x4xf32>,
    return
  }
  func.func @transform_0(%arg0: i32) -> (i32, i32) {
    %c0_i32 = arith.constant 0 : i32
    %c0_i32_0 = arith.constant 0 : i32
    return %arg0, %c0_i32 : i32, i32
  }
  func.func @transform_1(%arg0: i32) -> (i32, i32) {
    %c0_i32 = arith.constant 0 : i32
    %c0_i32_0 = arith.constant 0 : i32
    %c0_i32_1 = arith.constant 0 : i32
    return %c0_i32, %c0_i32_0 : i32, i32
  }
  func.func @transform_2(%arg0: i32) -> (i32, i32) {
    %c0_i32 = arith.constant 0 : i32
    %c0_i32_0 = arith.constant 0 : i32
    %c0_i32_1 = arith.constant 0 : i32
    return %c0_i32, %c0_i32_0 : i32, i32
  }
  func.func @transform_3(%arg0: i32) -> (i32, i32) {
    %c0_i32 = arith.constant 0 : i32
    %c0_i32_0 = arith.constant 0 : i32
    %c0_i32_1 = arith.constant 0 : i32
    return %c0_i32, %c0_i32_0 : i32, i32
  }
  func.func @transform_4(%arg0: i32) -> (i32, i32) {
    %c0_i32 = arith.constant 0 : i32
    %c0_i32_0 = arith.constant 0 : i32
    %c0_i32_1 = arith.constant 0 : i32
    return %c0_i32, %c0_i32_0 : i32, i32
  }
  func.func @transform_5(%arg0: i32) -> (i32, i32) {
    %c0_i32 = arith.constant 0 : i32
    %c0_i32_0 = arith.constant 0 : i32
    %c0_i32_1 = arith.constant 0 : i32
    return %c0_i32, %c0_i32_0 : i32, i32
  }
  func.func @transform_6(%arg0: i32) -> (i32, i32) {
    %c0_i32 = arith.constant 0 : i32
    %c0_i32_0 = arith.constant 0 : i32
    %c0_i32_1 = arith.constant 0 : i32
    return %c0_i32, %c0_i32_0 : i32, i32
  }
  func.func @transform_7(%arg0: i32) -> (i32, i32) {
    %c0_i32 = arith.constant 0 : i32
    %c0_i32_0 = arith.constant 0 : i32
    return %arg0, %c0_i32 : i32, i32
  }
}

</mosaic_0001>

<llo_original>
// kernel: linear_regression_head_two_hidden.1
$region0: #{linear_regression_head_two_hidden.1}
  #allocation0 [shape = 'u32[]', space=smem, size = 0x4, offset = 0x4, fixed_abs, tag = 'smem constant byte address 0x4 - core index']
  #allocation1 [shape = 'u32[144,128]{1,0:T(1,128)}', space=vmem, size = 0x12000, scoped, tag = 'internal scratch']
  %s0 = inlined_call_operand.vmem [shape: f32[8,32], index: 0, kind: input, shape index: {}]
  %s1 = inlined_call_operand.vmem [shape: bf16[32,128], index: 1, kind: input, shape index: {}]
  %s2 = inlined_call_operand.vmem [shape: bf16[1,128], index: 2, kind: input, shape index: {}]
  %s3 = inlined_call_operand.vmem [shape: bf16[128,64], index: 3, kind: input, shape index: {}]
  %s4 = inlined_call_operand.vmem [shape: bf16[1,64], index: 4, kind: input, shape index: {}]
  %s5 = inlined_call_operand.vmem [shape: bf16[64,4], index: 5, kind: input, shape index: {}]
  %s6 = inlined_call_operand.vmem [shape: f32[1,4], index: 6, kind: input, shape index: {}]
  %s7 = inlined_call_operand.vmem [shape: f32[8,4], index: 7, kind: output, shape index: {}]
  %s8 = sld [smem:[#allocation0]]
  $region38: #{linear_regression_head_two_hidden.1} parent=0
    _
  %s10 = ssub.s32 1, %s8
  %s11 = scalar_select 0, %s10, %s8
  // Predicated region
  $region2: #{linear_regression_head_two_hidden.1} parent=0 // pred_check
    _
  $region3: #{linear_regression_head_two_hidden.1} parent=0 // pred_check_branch
    %13 = sbr.rel (0) target = $region5
  $region4: #{linear_regression_head_two_hidden.1} parent=0 // pred_region
    _
  $region5: #{linear_regression_head_two_hidden.1} parent=0 // pred_fallthru
    _
  // Predicated region
  $region6: #{linear_regression_head_two_hidden.1} parent=0 // pred_check
    _
  $region7: #{linear_regression_head_two_hidden.1} parent=0 // pred_check_branch
    %15 = sbr.rel (0) target = $region9
  $region8: #{linear_regression_head_two_hidden.1} parent=0 // pred_region
    _
  $region9: #{linear_regression_head_two_hidden.1} parent=0 // pred_fallthru
    _
  // Predicated region
  $region10: #{linear_regression_head_two_hidden.1} parent=0 // pred_check
    _
  $region11: #{linear_regression_head_two_hidden.1} parent=0 // pred_check_branch
    %17 = sbr.rel (0) target = $region13
  $region12: #{linear_regression_head_two_hidden.1} parent=0 // pred_region
    _
  $region13: #{linear_regression_head_two_hidden.1} parent=0 // pred_fallthru
    _
  // Predicated region
  $region14: #{linear_regression_head_two_hidden.1} parent=0 // pred_check
    _
  $region15: #{linear_regression_head_two_hidden.1} parent=0 // pred_check_branch
    %19 = sbr.rel (0) target = $region17
  $region16: #{linear_regression_head_two_hidden.1} parent=0 // pred_region
    _
  $region17: #{linear_regression_head_two_hidden.1} parent=0 // pred_fallthru
    _
  // Predicated region
  $region18: #{linear_regression_head_two_hidden.1} parent=0 // pred_check
    _
  $region19: #{linear_regression_head_two_hidden.1} parent=0 // pred_check_branch
    %21 = sbr.rel (0) target = $region21
  $region20: #{linear_regression_head_two_hidden.1} parent=0 // pred_region
    _
  $region21: #{linear_regression_head_two_hidden.1} parent=0 // pred_fallthru
    _
  // Predicated region
  $region22: #{linear_regression_head_two_hidden.1} parent=0 // pred_check
    _
  $region23: #{linear_regression_head_two_hidden.1} parent=0 // pred_check_branch
    %23 = sbr.rel (0) target = $region25
  $region24: #{linear_regression_head_two_hidden.1} parent=0 // pred_region
    _
  $region25: #{linear_regression_head_two_hidden.1} parent=0 // pred_fallthru
    _
  // Predicated region
  $region26: #{linear_regression_head_two_hidden.1} parent=0 // pred_check
    _
  $region27: #{linear_regression_head_two_hidden.1} parent=0 // pred_check_branch
    %25 = sbr.rel (0) target = $region29
  $region28: #{linear_regression_head_two_hidden.1} parent=0 // pred_region
    _
  $region29: #{linear_regression_head_two_hidden.1} parent=0 // pred_fallthru
    _
  %v27 = vld [vmem:[%s0] sm:$0xff]
  %v28 = vpack.c.bf16 %v27, %v27
  %v29 = vld [vmem:[%s1] sm:$0xf]
  %v30 = vld [vmem:[%s1 + $0x4] sm:$0xf]
  %v31 = vld [vmem:[%s1 + $0x8] sm:$0xf]
  %v32 = vld [vmem:[%s1 + $0xc] sm:$0xf]
  %v37 = vunpack.c.l.b16 %v29
  %v38 = vunpack.c.l.b16 %v30
  %v39 = vunpack.c.l.b16 %v31
  %v40 = vunpack.c.l.b16 %v32
  %v41 = vpack.c.b16 %v38, %v37
  %v42 = vpack.c.b16 %v40, %v39
  %vm45 = vcmask 261120
  %v47 = vsel %vm45, %v28, 0
  %49 = vmatprep.subr.bf16.mxu0 0
  %50 = vmatpush1.bf16.msra.mxu0 0
  %51 = vmatprep.subr.bf16.mxu0 0
  %52 = vmatpush1.bf16.msra.mxu0 0
  %53 = vmatprep.subr.bf16.mxu0 0
  %54 = vmatpush1.bf16.msra.mxu0 0
  %55 = vmatprep.subr.bf16.mxu0 0
  %56 = vmatpush1.bf16.msra.mxu0 0
  %57 = vmatprep.subr.bf16.mxu0 0
  %58 = vmatpush1.bf16.msra.mxu0 0
  %59 = vmatprep.subr.bf16.mxu0 0
  %60 = vmatpush1.bf16.msra.mxu0 0
  %61 = vmatprep.subr.bf16.mxu0 0
  %62 = vmatpush1.bf16.msra.mxu0 %v42
  %63 = vmatprep.subr.bf16.mxu0 0
  %64 = vmatpush1.bf16.msra.mxu0 %v41
  %65 = vmatprep.subr.bf16.mxu0 0
  %66 = vmatpush2.bf16.msra.mxu0 0
  %67 = vmatprep.subr.bf16.mxu0 0
  %68 = vmatpush2.bf16.msra.mxu0 0
  %69 = vmatprep.subr.bf16.mxu0 0
  %70 = vmatpush2.bf16.msra.mxu0 0
  %71 = vmatprep.subr.bf16.mxu0 0
  %72 = vmatpush2.bf16.msra.mxu0 0
  %73 = vmatprep.subr.bf16.mxu0 0
  %74 = vmatpush2.bf16.msra.mxu0 0
  %75 = vmatprep.subr.bf16.mxu0 0
  %76 = vmatpush2.bf16.msra.mxu0 0
  %77 = vmatprep.subr.bf16.mxu0 0
  %78 = vmatpush2.bf16.msra.mxu0 0
  %79 = vmatprep.subr.bf16.mxu0 0
  %80 = vmatpush2.bf16.msra.mxu0 0
  %81 = vmatprep.mubr.bf16.mxu0 0
  %82 = vmatmul.mubr.bf16.gmra.mxu0 %v47
  %v83 = vpop.f32.mrf.mxu0
  %v84 = vadd.f32 0.0, %v83
  %v85 = vpop.f32.mrf.mxu0
  %v86 = vpop.f32.mrf.mxu0
  %v87 = vpop.f32.mrf.mxu0
  %88 = vdwg.mxu0
  %v89 = vpack.c.bf16 %v84, %v84
  %v90 = vld [vmem:[%s2] sm:$0x1]
  %v92 = vpack.i.b16 %v90, %v90
  %v94 = vlaneseq
  %v95 = vshrl.u32 %v94, 7
  %v96 = vsub.s32 0, %v95
  %v97 = vrot.slane %v92, %v96
  %v98 = vadd.bf16 %v89, %v97
  %v99 = vmax.bf16 %v98, 0
  %v100 = vld [vmem:[%s3] sm:$0xf]
  %v101 = vld [vmem:[%s3 + $0x4] sm:$0xf]
  %v102 = vld [vmem:[%s3 + $0x8] sm:$0xf]
  %v103 = vld [vmem:[%s3 + $0xc] sm:$0xf]
  %v104 = vld [vmem:[%s3 + $0x10] sm:$0xf]
  %v105 = vld [vmem:[%s3 + $0x14] sm:$0xf]
  %v106 = vld [vmem:[%s3 + $0x18] sm:$0xf]
  %v107 = vld [vmem:[%s3 + $0x1c] sm:$0xf]
  %v108 = vld [vmem:[%s3 + $0x20] sm:$0xf]
  %v109 = vld [vmem:[%s3 + $0x24] sm:$0xf]
  %v110 = vld [vmem:[%s3 + $0x28] sm:$0xf]
  %v111 = vld [vmem:[%s3 + $0x2c] sm:$0xf]
  %v112 = vld [vmem:[%s3 + $0x30] sm:$0xf]
  %v113 = vld [vmem:[%s3 + $0x34] sm:$0xf]
  %v114 = vld [vmem:[%s3 + $0x38] sm:$0xf]
  %v115 = vld [vmem:[%s3 + $0x3c] sm:$0xf]
  %v132 = vunpack.c.l.b16 %v100
  %v133 = vunpack.c.l.b16 %v101
  %v134 = vunpack.c.l.b16 %v102
  %v135 = vunpack.c.l.b16 %v103
  %v136 = vunpack.c.l.b16 %v104
  %v137 = vunpack.c.l.b16 %v105
  %v138 = vunpack.c.l.b16 %v106
  %v139 = vunpack.c.l.b16 %v107
  %v140 = vunpack.c.l.b16 %v108
  %v141 = vunpack.c.l.b16 %v109
  %v142 = vunpack.c.l.b16 %v110
  %v143 = vunpack.c.l.b16 %v111
  %v144 = vunpack.c.l.b16 %v112
  %v145 = vunpack.c.l.b16 %v113
  %v146 = vunpack.c.l.b16 %v114
  %v147 = vunpack.c.l.b16 %v115
  %v148 = vpack.c.b16 %v133, %v132
  %v149 = vpack.c.b16 %v135, %v134
  %v150 = vpack.c.b16 %v137, %v136
  %v151 = vpack.c.b16 %v139, %v138
  %v152 = vpack.c.b16 %v141, %v140
  %v153 = vpack.c.b16 %v143, %v142
  %v154 = vpack.c.b16 %v145, %v144
  %v155 = vpack.c.b16 %v147, %v146
  %164 = vmatprep.subr.bf16.mxu0 0
  %165 = vmatpush1.bf16.msra.mxu0 %v155
  %166 = vmatprep.subr.bf16.mxu0 0
  %167 = vmatpush1.bf16.msra.mxu0 %v154
  %168 = vmatprep.subr.bf16.mxu0 0
  %169 = vmatpush1.bf16.msra.mxu0 %v153
  %170 = vmatprep.subr.bf16.mxu0 0
  %171 = vmatpush1.bf16.msra.mxu0 %v152
  %172 = vmatprep.subr.bf16.mxu0 0
  %173 = vmatpush1.bf16.msra.mxu0 %v151
  %174 = vmatprep.subr.bf16.mxu0 0
  %175 = vmatpush1.bf16.msra.mxu0 %v150
  %176 = vmatprep.subr.bf16.mxu0 0
  %177 = vmatpush1.bf16.msra.mxu0 %v149
  %178 = vmatprep.subr.bf16.mxu0 0
  %179 = vmatpush1.bf16.msra.mxu0 %v148
  %180 = vmatprep.subr.bf16.mxu0 0
  %181 = vmatpush2.bf16.msra.mxu0 0
  %182 = vmatprep.subr.bf16.mxu0 0
  %183 = vmatpush2.bf16.msra.mxu0 0
  %184 = vmatprep.subr.bf16.mxu0 0
  %185 = vmatpush2.bf16.msra.mxu0 0
  %186 = vmatprep.subr.bf16.mxu0 0
  %187 = vmatpush2.bf16.msra.mxu0 0
  %188 = vmatprep.subr.bf16.mxu0 0
  %189 = vmatpush2.bf16.msra.mxu0 0
  %190 = vmatprep.subr.bf16.mxu0 0
  %191 = vmatpush2.bf16.msra.mxu0 0
  %192 = vmatprep.subr.bf16.mxu0 0
  %193 = vmatpush2.bf16.msra.mxu0 0
  %194 = vmatprep.subr.bf16.mxu0 0
  %195 = vmatpush2.bf16.msra.mxu0 0
  %196 = vmatprep.mubr.bf16.mxu0 0
  %197 = vmatmul.mubr.bf16.gmra.mxu0 %v99
  %v198 = vpop.f32.mrf.mxu0
  %v199 = vadd.f32 0.0, %v198
  %v200 = vpop.f32.mrf.mxu0
  %v201 = vpop.f32.mrf.mxu0
  %v202 = vpop.f32.mrf.mxu0
  %203 = vdwg.mxu0
  %v204 = vpack.c.bf16 %v199, %v199
  %v205 = vld [vmem:[%s4] sm:$0x1]
  %v207 = vpack.i.b16 %v205, %v205
  %v209 = vlaneseq
  %v210 = vshrl.u32 %v209, 7
  %v211 = vsub.s32 0, %v210
  %v212 = vrot.slane %v207, %v211
  %v213 = vadd.bf16 %v204, %v212
  %v214 = vmax.bf16 %v213, 0
  %v215 = vld [vmem:[%s5] sm:$0xf]
  %v216 = vld [vmem:[%s5 + $0x4] sm:$0xf]
  %v217 = vld [vmem:[%s5 + $0x8] sm:$0xf]
  %v218 = vld [vmem:[%s5 + $0xc] sm:$0xf]
  %v219 = vld [vmem:[%s5 + $0x10] sm:$0xf]
  %v220 = vld [vmem:[%s5 + $0x14] sm:$0xf]
  %v221 = vld [vmem:[%s5 + $0x18] sm:$0xf]
  %v222 = vld [vmem:[%s5 + $0x1c] sm:$0xf]
  %v223 = vld [vmem:[%s6] sm:$0x1]
  %v225 = vlaneseq
  %v226 = vshrl.u32 %v225, 7
  %v227 = vsub.s32 0, %v226
  %v228 = vrot.slane %v223, %v227
  %v238 = vunpack.c.l.b16 %v215
  %v239 = vunpack.c.l.b16 %v216
  %v240 = vunpack.c.l.b16 %v217
  %v241 = vunpack.c.l.b16 %v218
  %v242 = vunpack.c.l.b16 %v219
  %v243 = vunpack.c.l.b16 %v220
  %v244 = vunpack.c.l.b16 %v221
  %v245 = vunpack.c.l.b16 %v222
  %v246 = vpack.c.b16 %v239, %v238
  %v247 = vpack.c.b16 %v241, %v240
  %v248 = vpack.c.b16 %v243, %v242
  %v249 = vpack.c.b16 %v245, %v244
  %vm254 = vcmask 523264
  %v256 = vsel %vm254, %v214, 0
  %258 = vmatprep.subr.bf16.mxu0 0
  %259 = vmatpush1.bf16.msra.mxu0 0
  %260 = vmatprep.subr.bf16.mxu0 0
  %261 = vmatpush1.bf16.msra.mxu0 0
  %262 = vmatprep.subr.bf16.mxu0 0
  %263 = vmatpush1.bf16.msra.mxu0 0
  %264 = vmatprep.subr.bf16.mxu0 0
  %265 = vmatpush1.bf16.msra.mxu0 0
  %266 = vmatprep.subr.bf16.mxu0 0
  %267 = vmatpush1.bf16.msra.mxu0 %v249
  %268 = vmatprep.subr.bf16.mxu0 0
  %269 = vmatpush1.bf16.msra.mxu0 %v248
  %270 = vmatprep.subr.bf16.mxu0 0
  %271 = vmatpush1.bf16.msra.mxu0 %v247
  %272 = vmatprep.subr.bf16.mxu0 0
  %273 = vmatpush1.bf16.msra.mxu0 %v246
  %274 = vmatprep.subr.bf16.mxu0 0
  %275 = vmatpush2.bf16.msra.mxu0 0
  %276 = vmatprep.subr.bf16.mxu0 0
  %277 = vmatpush2.bf16.msra.mxu0 0
  %278 = vmatprep.subr.bf16.mxu0 0
  %279 = vmatpush2.bf16.msra.mxu0 0
  %280 = vmatprep.subr.bf16.mxu0 0
  %281 = vmatpush2.bf16.msra.mxu0 0
  %282 = vmatprep.subr.bf16.mxu0 0
  %283 = vmatpush2.bf16.msra.mxu0 0
  %284 = vmatprep.subr.bf16.mxu0 0
  %285 = vmatpush2.bf16.msra.mxu0 0
  %286 = vmatprep.subr.bf16.mxu0 0
  %287 = vmatpush2.bf16.msra.mxu0 0
  %288 = vmatprep.subr.bf16.mxu0 0
  %289 = vmatpush2.bf16.msra.mxu0 0
  %290 = vmatprep.mubr.bf16.mxu0 0
  %291 = vmatmul.mubr.bf16.gmra.mxu0 %v256
  %v292 = vpop.f32.mrf.mxu0
  %v293 = vadd.f32 %v228, %v292
  %v294 = vpop.f32.mrf.mxu0
  %v295 = vpop.f32.mrf.mxu0
  %v296 = vpop.f32.mrf.mxu0
  %297 = vdwg.mxu0
  %v298 = vxor.u32 %v293, 2147483648
  %v299 = vmul.f32 %v298, 1.442695
  %v300 = vpow.pop %v299
  %v301 = vadd.f32 %v300, 1.0
  %v302 = vrcp.pop %v301
  %v303 = vmul.f32 1.0, %v302
  %v304 = vmul.f32 %v303, 3.0
  %vm305 = vcmask 31744
  %306 = vst.msk [vmem:[%s7] sm:$0xff] %vm305, %v304
  // Predicated region
  $region30: #{linear_regression_head_two_hidden.1} parent=0 // pred_check
    _
  $region31: #{linear_regression_head_two_hidden.1} parent=0 // pred_check_branch
    %308 = sbr.rel (0) target = $region33
  $region32: #{linear_regression_head_two_hidden.1} parent=0 // pred_region
    _
  $region33: #{linear_regression_head_two_hidden.1} parent=0 // pred_fallthru
    _
  // Predicated region
  $region34: #{linear_regression_head_two_hidden.1} parent=0 // pred_check
    _
  $region35: #{linear_regression_head_two_hidden.1} parent=0 // pred_check_branch
    %310 = sbr.rel (0) target = $region37
  $region36: #{linear_regression_head_two_hidden.1} parent=0 // pred_region
    _
  $region37: #{linear_regression_head_two_hidden.1} parent=0 // pred_fallthru
    _

</llo_original>
